<compile_context>
chip_gen: v6e
topology: v6e:2x2x1
jax: 0.10.0
libtpu: 0.0.40
codegen_flags: <defaults>
</compile_context>

<pallas_src>
import functools

import jax
import jax.numpy as jnp
from jax import lax
from jax.experimental import pallas as pl
from jax.experimental.pallas import tpu as pltpu

IN_DIM = 150
HID_DIM = 50
OUT_DIM = 1

# dot_general dimension numbers for  A[m, k] @ B[n, k].T -> [m, n]
_NT = (((1,), (1,)), ((), ()))


def _round_up(n: int, m: int) -> int:
    return ((n + m - 1) // m) * m


def _mlp_kernel(x_ref, w1_ref, b1_ref, w2_ref, b2_ref, w3_ref, b3_ref, o_ref):
    # All three layers fused: the whole weight set lives in VMEM, so each batch
    # tile is three MXU matmuls + VPU relu + EUP tanh in one pass.
    x = x_ref[...]                                                   # (TB, 150)
    h1 = lax.dot_general(x, w1_ref[...], _NT,
                         preferred_element_type=jnp.float32) + b1_ref[...]
    h1 = jnp.maximum(h1, 0.0)                                        # (TB, 50)
    h2 = lax.dot_general(h1, w2_ref[...], _NT,
                         preferred_element_type=jnp.float32) + b2_ref[...]
    h2 = jnp.maximum(h2, 0.0)                                        # (TB, 50)
    # Last layer computed as w3 @ h2.T so the result is (1, TB): batch lands on
    # the lane axis and the output store is lane-dense (no masked (TB,1) stores).
    z = lax.dot_general(w3_ref[...], h2, _NT,
                        preferred_element_type=jnp.float32) + b3_ref[...]
    # sigmoid(z) = 0.5 * (tanh(z/2) + 1): tanh runs on the EUP slot, no divide.
    o_ref[...] = (0.5 * (jnp.tanh(0.5 * z) + 1.0)).astype(o_ref.dtype)


@functools.partial(jax.jit, static_argnames=("tile_b",))
def game_predictor_final(x, w1, b1, w2, b2, w3, b3, *, tile_b=1024):
    """x: (B, 150) f32; weights in PyTorch layout w: [out, in], b: (1, out)."""
    B = x.shape[0]
    if B <= tile_b:
        tile = _round_up(B, 8)          # single grid step covering the whole batch
    else:
        # Multi-tile path: lane-dense (1, tile) output blocks require tile % 128 == 0.
        assert tile_b % 128 == 0, "tile_b must be a multiple of 128"
        tile = tile_b                   # keep <= ~2-4K so v5e's scoped VMEM is happy
    b_pad = _round_up(B, tile)
    if b_pad != B:
        x = jnp.pad(x, ((0, b_pad - B), (0, 0)))
    num_tiles = b_pad // tile

    # Whole-array VMEM residents for the (tiny) parameters: DMA'd once,
    # no per-step re-fetch and no 2x double-buffer reservation.
    vmem_resident = lambda: pl.BlockSpec(memory_space=pltpu.MemorySpace.VMEM)

    x_spec = pl.BlockSpec((tile, IN_DIM), lambda i: (i, 0))
    # If profiling still shows exposed input DMA (per-step compute is tiny), deepen
    # the x pipeline with: pl.BlockSpec((tile, IN_DIM), lambda i: (i, 0),
    #                                   pipeline_mode=pl.Buffered(3))

    # Advisory cost estimate: tiny, bandwidth-bound custom call.
    param_bytes = 4 * (w1.size + b1.size + w2.size + b2.size + w3.size + b3.size)
    cost = pl.CostEstimate(
        flops=2 * b_pad * (IN_DIM * HID_DIM + HID_DIM * HID_DIM + HID_DIM * OUT_DIM),
        transcendentals=b_pad,
        bytes_accessed=b_pad * (IN_DIM + OUT_DIM) * 4 + param_bytes,
    )

    out_row = pl.pallas_call(
        _mlp_kernel,
        out_shape=jax.ShapeDtypeStruct((1, b_pad), jnp.float32),
        grid_spec=pltpu.PrefetchScalarGridSpec(
            num_scalar_prefetch=0,
            grid=(num_tiles,),
            in_specs=[
                x_spec,
                vmem_resident(),   # w1 (50, 150)
                vmem_resident(),   # b1 (1, 50)
                vmem_resident(),   # w2 (50, 50)
                vmem_resident(),   # b2 (1, 50)
                vmem_resident(),   # w3 (1, 50)
                vmem_resident(),   # b3 (1, 1)
            ],
            out_specs=pl.BlockSpec((1, tile), lambda i: (0, i)),
        ),
        compiler_params=pltpu.CompilerParams(
            dimension_semantics=("parallel",)),
        cost_estimate=cost,
    )(x, w1, b1, w2, b2, w3, b3)

    # Lane-dense (1, b_pad) row -> column vector, drop batch padding.
    return out_row.reshape(b_pad, OUT_DIM)[:B]


def init_params(key):
    """Deterministic synthetic init matching nn.Linear layout: w [out, in], b (1, out)."""
    ks = jax.random.split(key, 6)

    def linear(kw, kb, fan_in, fan_out):
        bound = 1.0 / (fan_in ** 0.5)
        w = jax.random.uniform(kw, (fan_out, fan_in), jnp.float32, -bound, bound)
        b = jax.random.uniform(kb, (1, fan_out), jnp.float32, -bound, bound)
        return w, b

    w1, b1 = linear(ks[0], ks[1], IN_DIM, HID_DIM)
    w2, b2 = linear(ks[2], ks[3], HID_DIM, HID_DIM)
    w3, b3 = linear(ks[4], ks[5], HID_DIM, OUT_DIM)
    return w1, b1, w2, b2, w3, b3


def _reference(x, w1, b1, w2, b2, w3, b3):
    h1 = jnp.maximum(x @ w1.T + b1, 0.0)
    h2 = jnp.maximum(h1 @ w2.T + b2, 0.0)
    return jax.nn.sigmoid(h2 @ w3.T + b3)


if __name__ == "__main__":
    key = jax.random.PRNGKey(0)
    kx1, kx2, kp = jax.random.split(key, 3)
    params = init_params(kp)

    # Small single-tile case.
    x_small = jax.random.normal(kx1, (16, IN_DIM), jnp.float32)
    out_small = game_predictor_final(x_small, *params)
    jax.block_until_ready(out_small)
    ref_small = _reference(x_small, *params)
    assert out_small.shape == (16, OUT_DIM)
    assert jnp.allclose(out_small, ref_small, atol=1e-4, rtol=1e-4)

    # Multi-tile case: exercises batch padding (300 -> 384), 3 grid steps, and
    # the lane-dense multi-block output path.
    x_big = jax.random.normal(kx2, (300, IN_DIM), jnp.float32)
    out_big = game_predictor_final(x_big, *params, tile_b=128)
    jax.block_until_ready(out_big)
    ref_big = _reference(x_big, *params)
    assert out_big.shape == (300, OUT_DIM)
    assert jnp.allclose(out_big, ref_big, atol=1e-4, rtol=1e-4)

    print("KERNEL_OK")
</pallas_src>

<mosaic_0001>
module attributes {stable_mosaic.version = 11 : i64} {
  func.func @_mlp_kernel(%arg0: i32, %arg1: memref<16x150xf32, #tpu.memory_space<vmem>>, %arg2: memref<50x150xf32, #tpu.memory_space<vmem>>, %arg3: memref<1x50xf32, #tpu.memory_space<vmem>>, %arg4: memref<50x50xf32, #tpu.memory_space<vmem>>, %arg5: memref<1x50xf32, #tpu.memory_space<vmem>>, %arg6: memref<1x50xf32, #tpu.memory_space<vmem>>, %arg7: memref<1x1xf32, #tpu.memory_space<vmem>>, %arg8: memref<1x16xf32, #tpu.memory_space<vmem>>) attributes {dimension_semantics = [#tpu.dimension_semantics<parallel>], iteration_bounds = array<i64: 1>, scalar_prefetch = 0 : i64, scratch_operands = 0 : i64, tpu.core_type = #tpu.core_type<tc>, window_params = [{transform_indices = @transform_0, window_bounds = array<i64: 16, 150>}, {pipeline_mode = #tpu.pipeline_mode<synchronous>, transform_indices = @transform_1, window_bounds = array<i64: 50, 150>}, {pipeline_mode = #tpu.pipeline_mode<synchronous>, transform_indices = @transform_2, window_bounds = array<i64: 1, 50>}, {pipeline_mode = #tpu.pipeline_mode<synchronous>, transform_indices = @transform_3, window_bounds = array<i64: 50, 50>}, {pipeline_mode = #tpu.pipeline_mode<synchronous>, transform_indices = @transform_4, window_bounds = array<i64: 1, 50>}, {pipeline_mode = #tpu.pipeline_mode<synchronous>, transform_indices = @transform_5, window_bounds = array<i64: 1, 50>}, {pipeline_mode = #tpu.pipeline_mode<synchronous>, transform_indices = @transform_6, window_bounds = array<i64: 1, 1>}, {transform_indices = @transform_7, window_bounds = array<i64: 1, 16>}]} {
    %c0 = arith.constant 0 : index
    %c0_0 = arith.constant 0 : index
    %0 = vector.load %arg1[%c0, %c0_0] : memref<16x150xf32, #tpu.memory_space<vmem>>, vector<16x150xf32>
    %c0_1 = arith.constant 0 : index
    %c0_2 = arith.constant 0 : index
    %1 = vector.load %arg2[%c0_1, %c0_2] : memref<50x150xf32, #tpu.memory_space<vmem>>, vector<50x150xf32>
    %cst = arith.constant dense<0.000000e+00> : vector<16x50xf32>
    %2 = tpu.matmul %0, %1, %cst {dimension_numbers = #tpu.dot_dimension_numbers<[1], [1], [0], [0], [0, 0, 1, 0], [], []>} : vector<16x150xf32>, vector<50x150xf32>, vector<16x50xf32> -> vector<16x50xf32>
    %c0_3 = arith.constant 0 : index
    %c0_4 = arith.constant 0 : index
    %3 = vector.load %arg3[%c0_3, %c0_4] : memref<1x50xf32, #tpu.memory_space<vmem>>, vector<1x50xf32>
    %4 = vector.broadcast %3 : vector<1x50xf32> to vector<16x50xf32>
    %5 = arith.addf %2, %4 : vector<16x50xf32>
    %cst_5 = arith.constant 0.000000e+00 : f32
    %6 = vector.broadcast %cst_5 : f32 to vector<16x50xf32>
    %7 = arith.maximumf %5, %6 : vector<16x50xf32>
    %c0_6 = arith.constant 0 : index
    %c0_7 = arith.constant 0 : index
    %8 = vector.load %arg4[%c0_6, %c0_7] : memref<50x50xf32, #tpu.memory_space<vmem>>, vector<50x50xf32>
    %cst_8 = arith.constant dense<0.000000e+00> : vector<16x50xf32>
    %9 = tpu.matmul %7, %8, %cst_8 {dimension_numbers = #tpu.dot_dimension_numbers<[1], [1], [0], [0], [0, 0, 1, 0], [], []>} : vector<16x50xf32>, vector<50x50xf32>, vector<16x50xf32> -> vector<16x50xf32>
    %c0_9 = arith.constant 0 : index
    %c0_10 = arith.constant 0 : index
    %10 = vector.load %arg5[%c0_9, %c0_10] : memref<1x50xf32, #tpu.memory_space<vmem>>, vector<1x50xf32>
    %11 = vector.broadcast %10 : vector<1x50xf32> to vector<16x50xf32>
    %12 = arith.addf %9, %11 : vector<16x50xf32>
    %cst_11 = arith.constant 0.000000e+00 : f32
    %13 = vector.broadcast %cst_11 : f32 to vector<16x50xf32>
    %14 = arith.maximumf %12, %13 : vector<16x50xf32>
    %c0_12 = arith.constant 0 : index
    %c0_13 = arith.constant 0 : index
    %15 = vector.load %arg6[%c0_12, %c0_13] : memref<1x50xf32, #tpu.memory_space<vmem>>, vector<1x50xf32>
    %cst_14 = arith.constant dense<0.000000e+00> : vector<1x16xf32>
    %16 = tpu.matmul %15, %14, %cst_14 {dimension_numbers = #tpu.dot_dimension_numbers<[1], [1], [0], [0], [0, 0, 1, 0], [], []>} : vector<1x50xf32>, vector<16x50xf32>, vector<1x16xf32> -> vector<1x16xf32>
    %c0_15 = arith.constant 0 : index
    %c0_16 = arith.constant 0 : index
    %17 = vector.load %arg7[%c0_15, %c0_16] : memref<1x1xf32, #tpu.memory_space<vmem>>, vector<1x1xf32>
    %18 = vector.broadcast %17 : vector<1x1xf32> to vector<1x16xf32>
    %19 = arith.addf %16, %18 : vector<1x16xf32>
    %cst_17 = arith.constant 5.000000e-01 : f32
    %20 = vector.broadcast %cst_17 : f32 to vector<1x16xf32>
    %21 = arith.mulf %20, %19 : vector<1x16xf32>
    %22 = math.tanh %21 : vector<1x16xf32>
    %cst_18 = arith.constant 1.000000e+00 : f32
    %23 = vector.broadcast %cst_18 : f32 to vector<1x16xf32>
    %24 = arith.addf %22, %23 : vector<1x16xf32>
    %cst_19 = arith.constant 5.000000e-01 : f32
    %25 = vector.broadcast %cst_19 : f32 to vector<1x16xf32>
    %26 = arith.mulf %25, %24 : vector<1x16xf32>
    %c0_20 = arith.constant 0 : index
    %c0_21 = arith.constant 0 : index
    %27 = vector.load %arg8[%c0_20, %c0_21] : memref<1x16xf32, #tpu.memory_space<vmem>>, vector<1x16xf32>
    tpu.vector_store %arg8[%c0_20, %c0_21], %26 {strides = array<i32>} : memref<1x16xf32, #tpu.memory_space<vmem>>, vector<1x16xf32>,
    return
  }
  func.func @transform_0(%arg0: i32) -> (i32, i32) {
    %c0_i32 = arith.constant 0 : i32
    %c0_i32_0 = arith.constant 0 : i32
    return %arg0, %c0_i32 : i32, i32
  }
  func.func @transform_1(%arg0: i32) -> (i32, i32) {
    %c0_i32 = arith.constant 0 : i32
    %c0_i32_0 = arith.constant 0 : i32
    %c0_i32_1 = arith.constant 0 : i32
    return %c0_i32, %c0_i32_0 : i32, i32
  }
  func.func @transform_2(%arg0: i32) -> (i32, i32) {
    %c0_i32 = arith.constant 0 : i32
    %c0_i32_0 = arith.constant 0 : i32
    %c0_i32_1 = arith.constant 0 : i32
    return %c0_i32, %c0_i32_0 : i32, i32
  }
  func.func @transform_3(%arg0: i32) -> (i32, i32) {
    %c0_i32 = arith.constant 0 : i32
    %c0_i32_0 = arith.constant 0 : i32
    %c0_i32_1 = arith.constant 0 : i32
    return %c0_i32, %c0_i32_0 : i32, i32
  }
  func.func @transform_4(%arg0: i32) -> (i32, i32) {
    %c0_i32 = arith.constant 0 : i32
    %c0_i32_0 = arith.constant 0 : i32
    %c0_i32_1 = arith.constant 0 : i32
    return %c0_i32, %c0_i32_0 : i32, i32
  }
  func.func @transform_5(%arg0: i32) -> (i32, i32) {
    %c0_i32 = arith.constant 0 : i32
    %c0_i32_0 = arith.constant 0 : i32
    %c0_i32_1 = arith.constant 0 : i32
    return %c0_i32, %c0_i32_0 : i32, i32
  }
  func.func @transform_6(%arg0: i32) -> (i32, i32) {
    %c0_i32 = arith.constant 0 : i32
    %c0_i32_0 = arith.constant 0 : i32
    %c0_i32_1 = arith.constant 0 : i32
    return %c0_i32, %c0_i32_0 : i32, i32
  }
  func.func @transform_7(%arg0: i32) -> (i32, i32) {
    %c0_i32 = arith.constant 0 : i32
    %c0_i32_0 = arith.constant 0 : i32
    return %c0_i32, %arg0 : i32, i32
  }
}

</mosaic_0001>

<llo_original>
// kernel: game_predictor_final.1
$region0: #{game_predictor_final.1}
  #allocation0 [shape = 'u32[]', space=smem, size = 0x4, offset = 0x4, fixed_abs, tag = 'smem constant byte address 0x4 - core index']
  #allocation1 [shape = 'u32[144,128]{1,0:T(1,128)}', space=vmem, size = 0x12000, scoped, tag = 'internal scratch']
  #allocation2 [shape = 'f32[1,1]{1,0:T(1,128)S(1)}', space=vmem, size = 0x200, scoped, tag = 'scoped memory for game_predictor_final.1']
  %s0 = inlined_call_operand.hbm [shape: f32[16,150], index: 0, kind: input, shape index: {}]
  %s1 = inlined_call_operand.hbm [shape: f32[50,150], index: 1, kind: input, shape index: {}]
  %s2 = inlined_call_operand.vmem [shape: f32[1,50], index: 2, kind: input, shape index: {}]
  %s3 = inlined_call_operand.hbm [shape: f32[50,50], index: 3, kind: input, shape index: {}]
  %s4 = inlined_call_operand.vmem [shape: f32[1,50], index: 4, kind: input, shape index: {}]
  %s5 = inlined_call_operand.vmem [shape: f32[1,50], index: 5, kind: input, shape index: {}]
  %s6 = inlined_call_operand.<no memory space> [shape: f32[1,1], index: 6, kind: input, shape index: {}]
  %s7 = inlined_call_operand.hbm [shape: f32[1,16], index: 7, kind: output, shape index: {}]
  %s8 = sld [smem:[#allocation0]]
  $region50: #{game_predictor_final.1} parent=0
    _
  %s10 = ssub.s32 1, %s8
  %s11 = scalar_select 0, %s10, %s8
  %v12 = vstv %s6
  %13 = vst [vmem:[#allocation2] sm:$0x1] %v12
  $region1: #{game_predictor_final.1} parent=0
    #allocation3 [shape = 'u8[16384]{0}', space=vmem, size = 0x4000, scoped, tag = 'input window, operand 0, single buffered']
    #allocation4 [shape = 's32[1]{0}', space=sflag, size = 0x4, scoped, tag = 'scoped memory for game_predictor_final.1']
    #allocation5 [shape = 's32[1]{0}', space=sflag, size = 0x4, scoped, tag = 'scoped memory for game_predictor_final.1']
    #allocation6 [shape = 'u8[57344]{0}', space=vmem, size = 0xe000, scoped, tag = 'input window, operand 1, single buffered']
    #allocation7 [shape = 's32[1]{0}', space=sflag, size = 0x4, scoped, tag = 'scoped memory for game_predictor_final.1']
    #allocation8 [shape = 'u8[28672]{0}', space=vmem, size = 0x7000, scoped, tag = 'input window, operand 3, single buffered']
    #allocation9 [shape = 'u8[512]{0}', space=vmem, size = 0x400, scoped, tag = 'output window, operand 0, single buffered']
    %14 = vsyncpa [#allocation4], 0
    %15 = vsyncpa [#allocation7], 0
    %16 = vsyncpa [#allocation5], 0
    // Predicated region
    $region2: #{game_predictor_final.1} parent=1 // pred_check
      _
    $region3: #{game_predictor_final.1} parent=1 // pred_check_branch
      %18 = sbr.rel (0) target = $region5
    $region4: #{game_predictor_final.1} parent=1 // pred_region
      %s20 = ssub.s32 512, 512
      %21 = vsyncadd [#allocation4], %s20
      %s22 = sshll.u32 [#allocation3], 4
      %s23 = int_to_ptr.vmem [resolvable:$true] %s22
      %28 = dma.hbm_to_vmem [thread:$0]  %s0, 512, %s23, [#allocation4], 256, 256, 16
    $region5: #{game_predictor_final.1} parent=1 // pred_fallthru
      _
    // Predicated region
    $region6: #{game_predictor_final.1} parent=1 // pred_check
      _
    $region7: #{game_predictor_final.1} parent=1 // pred_check_branch
      %30 = sbr.rel (0) target = $region9
    $region8: #{game_predictor_final.1} parent=1 // pred_region
      %s32 = ssub.s32 1792, 1792
      %33 = vsyncadd [#allocation7], %s32
      %s34 = sshll.u32 [#allocation6], 4
      %s35 = int_to_ptr.vmem [resolvable:$true] %s34
      %40 = dma.hbm_to_vmem [thread:$0]  %s1, 1792, %s35, [#allocation7], 256, 256, 16
    $region9: #{game_predictor_final.1} parent=1 // pred_fallthru
      _
    // Predicated region
    $region10: #{game_predictor_final.1} parent=1 // pred_check
      _
    $region11: #{game_predictor_final.1} parent=1 // pred_check_branch
      %42 = sbr.rel (0) target = $region13
    $region12: #{game_predictor_final.1} parent=1 // pred_region
      _
    $region13: #{game_predictor_final.1} parent=1 // pred_fallthru
      _
    // Predicated region
    $region14: #{game_predictor_final.1} parent=1 // pred_check
      _
    $region15: #{game_predictor_final.1} parent=1 // pred_check_branch
      %44 = sbr.rel (0) target = $region17
    $region16: #{game_predictor_final.1} parent=1 // pred_region
      %s46 = ssub.s32 896, 896
      %47 = vsyncadd [#allocation7], %s46
      %s48 = sshll.u32 [#allocation8], 4
      %s49 = int_to_ptr.vmem [resolvable:$true] %s48
      %54 = dma.hbm_to_vmem [thread:$0]  %s3, 896, %s49, [#allocation7], 128, 128, 8
    $region17: #{game_predictor_final.1} parent=1 // pred_fallthru
      _
    // Predicated region
    $region18: #{game_predictor_final.1} parent=1 // pred_check
      _
    $region19: #{game_predictor_final.1} parent=1 // pred_check_branch
      %56 = sbr.rel (0) target = $region21
    $region20: #{game_predictor_final.1} parent=1 // pred_region
      _
    $region21: #{game_predictor_final.1} parent=1 // pred_fallthru
      _
    // Predicated region
    $region22: #{game_predictor_final.1} parent=1 // pred_check
      _
    $region23: #{game_predictor_final.1} parent=1 // pred_check_branch
      %58 = sbr.rel (0) target = $region25
    $region24: #{game_predictor_final.1} parent=1 // pred_region
      _
    $region25: #{game_predictor_final.1} parent=1 // pred_fallthru
      _
    // Predicated region
    $region26: #{game_predictor_final.1} parent=1 // pred_check
      _
    $region27: #{game_predictor_final.1} parent=1 // pred_check_branch
      %60 = sbr.rel (0) target = $region29
    $region28: #{game_predictor_final.1} parent=1 // pred_region
      _
    $region29: #{game_predictor_final.1} parent=1 // pred_fallthru
      _
    // Predicated region
    $region30: #{game_predictor_final.1} parent=1 // pred_check
      _
    $region31: #{game_predictor_final.1} parent=1 // pred_check_branch
      %62 = sbr.rel (0) target = $region33
    $region32: #{game_predictor_final.1} parent=1 // pred_region
      %63 = dma.done [#allocation4], 512
    $region33: #{game_predictor_final.1} parent=1 // pred_fallthru
      _
    // Predicated region
    $region34: #{game_predictor_final.1} parent=1 // pred_check
      _
    $region35: #{game_predictor_final.1} parent=1 // pred_check_branch
      %65 = sbr.rel (0) target = $region37
    $region36: #{game_predictor_final.1} parent=1 // pred_region
      %66 = dma.done [#allocation7], 1792
    $region37: #{game_predictor_final.1} parent=1 // pred_fallthru
      _
    // Predicated region
    $region38: #{game_predictor_final.1} parent=1 // pred_check
      _
    $region39: #{game_predictor_final.1} parent=1 // pred_check_branch
      %68 = sbr.rel (0) target = $region41
    $region40: #{game_predictor_final.1} parent=1 // pred_region
      %69 = dma.done [#allocation7], 896
    $region41: #{game_predictor_final.1} parent=1 // pred_fallthru
      _
    %v70 = vld [vmem:[#allocation3] sm:$0xff]
    %v71 = vld [vmem:[#allocation3 + $0x8] sm:$0xff]
    %v72 = vld [vmem:[#allocation3 + $0x10] sm:$0xff]
    %v73 = vld [vmem:[#allocation3 + $0x18] sm:$0xff]
    %v74 = vld [vmem:[#allocation6] sm:$0xff]
    %v75 = vld [vmem:[#allocation6 + $0x8] sm:$0xff]
    %v76 = vld [vmem:[#allocation6 + $0x10] sm:$0xff]
    %v77 = vld [vmem:[#allocation6 + $0x18] sm:$0xff]
    %v78 = vld [vmem:[#allocation6 + $0x20] sm:$0xff]
    %v79 = vld [vmem:[#allocation6 + $0x28] sm:$0xff]
    %v80 = vld [vmem:[#allocation6 + $0x30] sm:$0xff]
    %v81 = vld [vmem:[#allocation6 + $0x38] sm:$0xff]
    %v82 = vld [vmem:[#allocation6 + $0x40] sm:$0xff]
    %v83 = vld [vmem:[#allocation6 + $0x48] sm:$0xff]
    %v84 = vld [vmem:[#allocation6 + $0x50] sm:$0xff]
    %v85 = vld [vmem:[#allocation6 + $0x58] sm:$0xff]
    %v86 = vld [vmem:[#allocation6 + $0x60] sm:$0x3]
    %v87 = vld [vmem:[#allocation6 + $0x68] sm:$0x3]
    %v88 = vld [vmem:[%s2] sm:$0x1]
    %v90 = vlaneseq
    %v91 = vshrl.u32 %v90, 7
    %v92 = vsub.s32 0, %v91
    %v93 = vrot.slane %v88, %v92
    %vm95 = vcmask 179200
    %v97 = vsel %vm95, %v71, 0
    %v100 = vsel %vm95, %v73, 0
    %v103 = vsel %vm95, %v75, 0
    %v106 = vsel %vm95, %v77, 0
    %v109 = vsel %vm95, %v79, 0
    %v112 = vsel %vm95, %v81, 0
    %v115 = vsel %vm95, %v83, 0
    %v118 = vsel %vm95, %v85, 0
    %v121 = vsel %vm95, %v87, 0
    %123 = vmatprep.subr.mxu0 0.0
    %124 = vmatpush1.xpose.msra.mxu0 0.0
    %125 = vmatprep.subr.mxu0 0.0
    %126 = vmatpush1.xpose.msra.mxu0 0.0
    %127 = vmatprep.subr.mxu0 0.0
    %128 = vmatpush1.xpose.msra.mxu0 0.0
    %129 = vmatprep.subr.mxu0 0.0
    %130 = vmatpush1.xpose.msra.mxu0 0.0
    %131 = vmatprep.subr.mxu0 0.0
    %132 = vmatpush1.xpose.msra.mxu0 0.0
    %133 = vmatprep.subr.mxu0 0.0
    %134 = vmatpush1.xpose.msra.mxu0 0.0
    %135 = vmatprep.subr.mxu0 0.0
    %136 = vmatpush1.xpose.msra.mxu0 0.0
    %137 = vmatprep.subr.mxu0 0.0
    %138 = vmatpush1.xpose.msra.mxu0 0.0
    %139 = vmatprep.subr.mxu0 0.0
    %140 = vmatpush1.xpose.msra.mxu0 0.0
    %141 = vmatprep.subr.mxu0 %v121
    %142 = vmatpush1.xpose.msra.mxu0 %v86
    %143 = vmatprep.subr.mxu0 %v118
    %144 = vmatpush1.xpose.msra.mxu0 %v84
    %145 = vmatprep.subr.mxu0 %v115
    %146 = vmatpush1.xpose.msra.mxu0 %v82
    %147 = vmatprep.subr.mxu0 %v112
    %148 = vmatpush1.xpose.msra.mxu0 %v80
    %149 = vmatprep.subr.mxu0 %v109
    %150 = vmatpush1.xpose.msra.mxu0 %v78
    %151 = vmatprep.subr.mxu0 %v106
    %152 = vmatpush1.xpose.msra.mxu0 %v76
    %153 = vmatprep.subr.mxu0 %v103
    %154 = vmatpush1.xpose.msra.mxu0 %v74
    %155 = vmatprep.subr.mxu0 0.0
    %156 = vmatpush2.xpose.msra.mxu0 0.0
    %157 = vmatprep.subr.mxu0 0.0
    %158 = vmatpush2.xpose.msra.mxu0 0.0
    %159 = vmatprep.subr.mxu0 0.0
    %160 = vmatpush2.xpose.msra.mxu0 0.0
    %161 = vmatprep.subr.mxu0 0.0
    %162 = vmatpush2.xpose.msra.mxu0 0.0
    %163 = vmatprep.subr.mxu0 0.0
    %164 = vmatpush2.xpose.msra.mxu0 0.0
    %165 = vmatprep.subr.mxu0 0.0
    %166 = vmatpush2.xpose.msra.mxu0 0.0
    %167 = vmatprep.subr.mxu0 0.0
    %168 = vmatpush2.xpose.msra.mxu0 0.0
    %169 = vmatprep.subr.mxu0 0.0
    %170 = vmatpush2.xpose.msra.mxu0 0.0
    %171 = vmatprep.subr.mxu0 0.0
    %172 = vmatpush2.xpose.msra.mxu0 0.0
    %173 = vmatprep.subr.mxu0 0.0
    %174 = vmatpush2.xpose.msra.mxu0 0.0
    %175 = vmatprep.subr.mxu0 0.0
    %176 = vmatpush2.xpose.msra.mxu0 0.0
    %177 = vmatprep.subr.mxu0 0.0
    %178 = vmatpush2.xpose.msra.mxu0 0.0
    %179 = vmatprep.subr.mxu0 0.0
    %180 = vmatpush2.xpose.msra.mxu0 0.0
    %181 = vmatprep.subr.mxu0 0.0
    %182 = vmatpush2.xpose.msra.mxu0 0.0
    %183 = vmatprep.subr.mxu0 0.0
    %184 = vmatpush2.xpose.msra.mxu0 0.0
    %185 = vmatprep.subr.mxu0 0.0
    %186 = vmatpush2.xpose.msra.mxu0 0.0
    %187 = vmatprep.mubr.f32.mxu0 %v97
    %188 = vmatmul.mubr.f32.gmra.mxu0 %v70
    %v189 = vpop.f32.mrf.mxu0
    %v190 = vadd.f32 %v93, %v189
    %v191 = vpop.f32.mrf.mxu0
    %192 = vmatprep.mubr.f32.mxu0 %v100
    %193 = vmatmul.mubr.f32.gmra.mxu0 %v72
    %v194 = vpop.f32.mrf.mxu0
    %v195 = vadd.f32 %v93, %v194
    %v196 = vpop.f32.mrf.mxu0
    %197 = vdwg.mxu0
    %v198 = vmax.f32 %v190, 0.0
    %v199 = vmax.f32 %v195, 0.0
    %v200 = vld [vmem:[#allocation8] sm:$0xff]
    %v201 = vld [vmem:[#allocation8 + $0x8] sm:$0xff]
    %v202 = vld [vmem:[#allocation8 + $0x10] sm:$0xff]
    %v203 = vld [vmem:[#allocation8 + $0x18] sm:$0xff]
    %v204 = vld [vmem:[#allocation8 + $0x20] sm:$0xff]
    %v205 = vld [vmem:[#allocation8 + $0x28] sm:$0xff]
    %v206 = vld [vmem:[#allocation8 + $0x30] sm:$0x3]
    %v207 = vld [vmem:[%s4] sm:$0x1]
    %v209 = vlaneseq
    %v210 = vshrl.u32 %v209, 7
    %v211 = vsub.s32 0, %v210
    %v212 = vrot.slane %v207, %v211
    %vm214 = vcmask 408576
    %v216 = vsel %vm214, %v198, 0
    %v219 = vsel %vm214, %v199, 0
    %v222 = vsel %vm214, %v200, 0
    %v225 = vsel %vm214, %v201, 0
    %v228 = vsel %vm214, %v202, 0
    %v231 = vsel %vm214, %v203, 0
    %v234 = vsel %vm214, %v204, 0
    %v237 = vsel %vm214, %v205, 0
    %v240 = vsel %vm214, %v206, 0
    %242 = vmatprep.subr.mxu0 0.0
    %243 = vmatpush1.xpose.msra.mxu0 0.0
    %244 = vmatprep.subr.mxu0 0.0
    %245 = vmatpush1.xpose.msra.mxu0 0.0
    %246 = vmatprep.subr.mxu0 0.0
    %247 = vmatpush1.xpose.msra.mxu0 0.0
    %248 = vmatprep.subr.mxu0 0.0
    %249 = vmatpush1.xpose.msra.mxu0 0.0
    %250 = vmatprep.subr.mxu0 0.0
    %251 = vmatpush1.xpose.msra.mxu0 0.0
    %252 = vmatprep.subr.mxu0 0.0
    %253 = vmatpush1.xpose.msra.mxu0 0.0
    %254 = vmatprep.subr.mxu0 0.0
    %255 = vmatpush1.xpose.msra.mxu0 0.0
    %256 = vmatprep.subr.mxu0 0.0
    %257 = vmatpush1.xpose.msra.mxu0 0.0
    %258 = vmatprep.subr.mxu0 0.0
    %259 = vmatpush1.xpose.msra.mxu0 0.0
    %260 = vmatprep.subr.mxu0 0.0
    %261 = vmatpush1.xpose.msra.mxu0 %v240
    %262 = vmatprep.subr.mxu0 0.0
    %263 = vmatpush1.xpose.msra.mxu0 %v237
    %264 = vmatprep.subr.mxu0 0.0
    %265 = vmatpush1.xpose.msra.mxu0 %v234
    %266 = vmatprep.subr.mxu0 0.0
    %267 = vmatpush1.xpose.msra.mxu0 %v231
    %268 = vmatprep.subr.mxu0 0.0
    %269 = vmatpush1.xpose.msra.mxu0 %v228
    %270 = vmatprep.subr.mxu0 0.0
    %271 = vmatpush1.xpose.msra.mxu0 %v225
    %272 = vmatprep.subr.mxu0 0.0
    %273 = vmatpush1.xpose.msra.mxu0 %v222
    %274 = vmatprep.subr.mxu0 0.0
    %275 = vmatpush2.xpose.msra.mxu0 0.0
    %276 = vmatprep.subr.mxu0 0.0
    %277 = vmatpush2.xpose.msra.mxu0 0.0
    %278 = vmatprep.subr.mxu0 0.0
    %279 = vmatpush2.xpose.msra.mxu0 0.0
    %280 = vmatprep.subr.mxu0 0.0
    %281 = vmatpush2.xpose.msra.mxu0 0.0
    %282 = vmatprep.subr.mxu0 0.0
    %283 = vmatpush2.xpose.msra.mxu0 0.0
    %284 = vmatprep.subr.mxu0 0.0
    %285 = vmatpush2.xpose.msra.mxu0 0.0
    %286 = vmatprep.subr.mxu0 0.0
    %287 = vmatpush2.xpose.msra.mxu0 0.0
    %288 = vmatprep.subr.mxu0 0.0
    %289 = vmatpush2.xpose.msra.mxu0 0.0
    %290 = vmatprep.subr.mxu0 0.0
    %291 = vmatpush2.xpose.msra.mxu0 0.0
    %292 = vmatprep.subr.mxu0 0.0
    %293 = vmatpush2.xpose.msra.mxu0 0.0
    %294 = vmatprep.subr.mxu0 0.0
    %295 = vmatpush2.xpose.msra.mxu0 0.0
    %296 = vmatprep.subr.mxu0 0.0
    %297 = vmatpush2.xpose.msra.mxu0 0.0
    %298 = vmatprep.subr.mxu0 0.0
    %299 = vmatpush2.xpose.msra.mxu0 0.0
    %300 = vmatprep.subr.mxu0 0.0
    %301 = vmatpush2.xpose.msra.mxu0 0.0
    %302 = vmatprep.subr.mxu0 0.0
    %303 = vmatpush2.xpose.msra.mxu0 0.0
    %304 = vmatprep.subr.mxu0 0.0
    %305 = vmatpush2.xpose.msra.mxu0 0.0
    %306 = vmatprep.mubr.f32.mxu0 0.0
    %307 = vmatmul.mubr.f32.gmra.mxu0 %v216
    %v308 = vpop.f32.mrf.mxu0
    %v309 = vadd.f32 %v212, %v308
    %v310 = vpop.f32.mrf.mxu0
    %311 = vmatprep.mubr.f32.mxu0 0.0
    %312 = vmatmul.mubr.f32.gmra.mxu0 %v219
    %v313 = vpop.f32.mrf.mxu0
    %v314 = vadd.f32 %v212, %v313
    %v315 = vpop.f32.mrf.mxu0
    %316 = vdwg.mxu0
    %v317 = vmax.f32 %v309, 0.0
    %v318 = vmax.f32 %v314, 0.0
    %v319 = vld [vmem:[%s5] sm:$0x1]
    %v320 = vld [vmem:[#allocation2] sm:$0x1]
    %322 = vset.pattern.permute.xlu0 0
    %323 = vperm.xlu0 %322, %v320
    %v324 = vpop.permute.xlu0 %323
    %v326 = vlaneseq
    %v327 = vshrl.u32 %v326, 7
    %v328 = vsub.s32 0, %v327
    %v329 = vrot.slane %v324, %v328
    %v331 = vsel %vm214, %v319, 0
    %v334 = vsel %vm214, %v317, 0
    %v337 = vsel %vm214, %v318, 0
    %339 = vmatprep.subr.mxu0 0.0
    %340 = vmatpush1.xpose.msra.mxu0 0.0
    %341 = vmatprep.subr.mxu0 0.0
    %342 = vmatpush1.xpose.msra.mxu0 0.0
    %343 = vmatprep.subr.mxu0 0.0
    %344 = vmatpush1.xpose.msra.mxu0 0.0
    %345 = vmatprep.subr.mxu0 0.0
    %346 = vmatpush1.xpose.msra.mxu0 0.0
    %347 = vmatprep.subr.mxu0 0.0
    %348 = vmatpush1.xpose.msra.mxu0 0.0
    %349 = vmatprep.subr.mxu0 0.0
    %350 = vmatpush1.xpose.msra.mxu0 0.0
    %351 = vmatprep.subr.mxu0 0.0
    %352 = vmatpush1.xpose.msra.mxu0 0.0
    %353 = vmatprep.subr.mxu0 0.0
    %354 = vmatpush1.xpose.msra.mxu0 0.0
    %355 = vmatprep.subr.mxu0 0.0
    %356 = vmatpush1.xpose.msra.mxu0 0.0
    %357 = vmatprep.subr.mxu0 0.0
    %358 = vmatpush1.xpose.msra.mxu0 0.0
    %359 = vmatprep.subr.mxu0 0.0
    %360 = vmatpush1.xpose.msra.mxu0 0.0
    %361 = vmatprep.subr.mxu0 0.0
    %362 = vmatpush1.xpose.msra.mxu0 0.0
    %363 = vmatprep.subr.mxu0 0.0
    %364 = vmatpush1.xpose.msra.mxu0 0.0
    %365 = vmatprep.subr.mxu0 0.0
    %366 = vmatpush1.xpose.msra.mxu0 0.0
    %367 = vmatprep.subr.mxu0 0.0
    %368 = vmatpush1.xpose.msra.mxu0 %v337
    %369 = vmatprep.subr.mxu0 0.0
    %370 = vmatpush1.xpose.msra.mxu0 %v334
    %371 = vmatprep.subr.mxu0 0.0
    %372 = vmatpush2.xpose.msra.mxu0 0.0
    %373 = vmatprep.subr.mxu0 0.0
    %374 = vmatpush2.xpose.msra.mxu0 0.0
    %375 = vmatprep.subr.mxu0 0.0
    %376 = vmatpush2.xpose.msra.mxu0 0.0
    %377 = vmatprep.subr.mxu0 0.0
    %378 = vmatpush2.xpose.msra.mxu0 0.0
    %379 = vmatprep.subr.mxu0 0.0
    %380 = vmatpush2.xpose.msra.mxu0 0.0
    %381 = vmatprep.subr.mxu0 0.0
    %382 = vmatpush2.xpose.msra.mxu0 0.0
    %383 = vmatprep.subr.mxu0 0.0
    %384 = vmatpush2.xpose.msra.mxu0 0.0
    %385 = vmatprep.subr.mxu0 0.0
    %386 = vmatpush2.xpose.msra.mxu0 0.0
    %387 = vmatprep.subr.mxu0 0.0
    %388 = vmatpush2.xpose.msra.mxu0 0.0
    %389 = vmatprep.subr.mxu0 0.0
    %390 = vmatpush2.xpose.msra.mxu0 0.0
    %391 = vmatprep.subr.mxu0 0.0
    %392 = vmatpush2.xpose.msra.mxu0 0.0
    %393 = vmatprep.subr.mxu0 0.0
    %394 = vmatpush2.xpose.msra.mxu0 0.0
    %395 = vmatprep.subr.mxu0 0.0
    %396 = vmatpush2.xpose.msra.mxu0 0.0
    %397 = vmatprep.subr.mxu0 0.0
    %398 = vmatpush2.xpose.msra.mxu0 0.0
    %399 = vmatprep.subr.mxu0 0.0
    %400 = vmatpush2.xpose.msra.mxu0 0.0
    %401 = vmatprep.subr.mxu0 0.0
    %402 = vmatpush2.xpose.msra.mxu0 0.0
    %403 = vmatprep.mubr.f32.mxu0 0.0
    %404 = vmatmul.mubr.f32.gmra.mxu0 %v331
    %v405 = vpop.f32.mrf.mxu0
    %v406 = vadd.f32 %v329, %v405
    %v407 = vpop.f32.mrf.mxu0
    %408 = vdwg.mxu0
    %v409 = vmul.f32 %v406, 0.5
    %v410 = vtanh.pop %v409
    %v411 = vadd.f32 %v410, 1.0
    %v412 = vmul.f32 %v411, 0.5
    %vm413 = vcmask 122880
    %414 = vst.msk [vmem:[#allocation9] sm:$0x1] %vm413, %v412
    // Predicated region
    $region42: #{game_predictor_final.1} parent=1 // pred_check
      _
    $region43: #{game_predictor_final.1} parent=1 // pred_check_branch
      %416 = sbr.rel (0) target = $region45
    $region44: #{game_predictor_final.1} parent=1 // pred_region
      %s418 = ssub.s32 16, 16
      %419 = vsyncadd [#allocation5], %s418
      %s421 = sshll.u32 [#allocation9], 4
      %s422 = int_to_ptr.vmem [resolvable:$true] %s421
      %424 = dma.vmem_to_hbm [thread:$0]  %s422, 16, %s7, [#allocation5]
    $region45: #{game_predictor_final.1} parent=1 // pred_fallthru
      _
    // Predicated region
    $region46: #{game_predictor_final.1} parent=1 // pred_check
      _
    $region47: #{game_predictor_final.1} parent=1 // pred_check_branch
      %426 = sbr.rel (0) target = $region49
    $region48: #{game_predictor_final.1} parent=1 // pred_region
      %427 = dma.done [#allocation5], 16
    $region49: #{game_predictor_final.1} parent=1 // pred_fallthru
      _
    %428 = vsyncpa [#allocation4], 1
    %429 = vsyncpa [#allocation7], 1
    %430 = vsyncpa [#allocation5], 1

</llo_original>
